<compile_context>
chip_gen: v5e
topology: v5e:2x2
jax: 0.10.0
libtpu: 0.0.40
codegen_flags: <defaults>
</compile_context>

<pallas_src>
import jax
import jax.numpy as jnp
from jax.experimental import pallas as pl
from jax.experimental.pallas import tpu as pltpu


def _round_up(n: int, m: int) -> int:
    return ((n + m - 1) // m) * m


def _cdiv(a: int, b: int) -> int:
    return -(-a // b)


def _mlp_kernel(x_ref, w1_ref, b1_ref, w2_ref, b2_ref, w3_ref, b3_ref, o_ref):
    # fc1 + relu: bf16 MXU inputs (K=16, underfill is irrelevant -- kernel is
    # DMA/overhead bound), f32 accumulate, f32 bias/ReLU.
    h = jnp.dot(x_ref[...], w1_ref[...], preferred_element_type=jnp.float32)
    h = jnp.maximum(h + b1_ref[...], 0.0)
    # fc2 + relu
    h = jnp.dot(h.astype(w2_ref.dtype), w2_ref[...],
                preferred_element_type=jnp.float32)
    h = jnp.maximum(h + b2_ref[...], 0.0)
    # fc3 (no activation); narrow (n_actions-wide) output block -> minimal writeback.
    out = jnp.dot(h.astype(w3_ref.dtype), w3_ref[...],
                  preferred_element_type=jnp.float32)
    o_ref[...] = (out + b3_ref[...]).astype(o_ref.dtype)


def prepare_params(params, *, use_bf16: bool = True):
    """One-time parameter prep: cast weights to the MXU dtype, keep biases as f32
    row vectors.  Do this once at init; the jitted forward then only launches the
    pallas_call (no per-call cast/pad ops)."""
    w1, b1, w2, b2, w3, b3 = params
    mxu = jnp.bfloat16 if use_bf16 else jnp.float32
    return (w1.astype(mxu), jnp.asarray(b1, jnp.float32).reshape(1, -1),
            w2.astype(mxu), jnp.asarray(b2, jnp.float32).reshape(1, -1),
            w3.astype(mxu), jnp.asarray(b3, jnp.float32).reshape(1, -1))


def _select_tile(B: int, tile_m: int):
    """Pick batch tile TM (multiple of 8) that avoids gross over-padding and,
    for large batches, yields >=2 grid steps so v7x's two TensorCores split it."""
    B8 = _round_up(max(B, 1), 8)
    n_tiles = max(1, _cdiv(B8, tile_m))
    if n_tiles == 1 and B8 >= 1024:
        n_tiles = 2                     # let megacore split a big single tile
    TM = _round_up(_cdiv(B8, n_tiles), 8)
    return TM, n_tiles * TM             # (tile, padded batch)


def network_forward(x, prepared_params, *, tile_m: int = 1024):
    """x: [B, history, input_dim] (or [B, input_dim*history]); returns [B, n_actions].

    prepared_params: output of prepare_params().  tile_m: max batch rows per grid
    step; VMEM footprint is ~1.3 KiB/row x 2 buffers, far under the scoped limit
    on v5e/v6e/v7x, so large tiles amortize the ~0.35 us per-step overhead.
    """
    w1, b1, w2, b2, w3, b3 = prepared_params
    B = x.shape[0]
    K = w1.shape[0]                      # input_dim * history (e.g. 16)
    N = w3.shape[1]                      # n_actions (e.g. 4)

    TM, B_pad = _select_tile(B, tile_m)

    # Stream x as (B_pad, K) in the MXU dtype.  Cast BEFORE any padding so the
    # (rare, <=7 row) pad pass touches half the bytes; no K lane-padding in HBM.
    x2d = x.reshape(B, -1).astype(w1.dtype)
    assert x2d.shape[1] == K, "input feature dim does not match fc1 weights"
    if B_pad != B:
        x2d = jnp.pad(x2d, ((0, B_pad - B), (0, 0)))

    # Weights/biases: one full block, constant index_map -> loaded once, VMEM-resident.
    def _const(arr):
        nd = arr.ndim
        return pl.BlockSpec(arr.shape, lambda i, _nd=nd: (0,) * _nd)

    out = pl.pallas_call(
        _mlp_kernel,
        out_shape=jax.ShapeDtypeStruct((B_pad, N), jnp.float32),
        grid=(B_pad // TM,),
        in_specs=[
            # Streamed activations; last block dim = full array dim (K), so the
            # (8,128) constraint is satisfied without lane padding.
            pl.BlockSpec((TM, K), lambda i: (i, 0)),
            _const(w1), _const(b1),
            _const(w2), _const(b2),
            _const(w3), _const(b3),
        ],
        # Narrow output block (TM, n_actions): last dim = full array dim, and the
        # writeback DMA is 16 B/row instead of a 128-lane padded f32 slab.
        out_specs=pl.BlockSpec((TM, N), lambda i: (i, 0)),
        compiler_params=pltpu.CompilerParams(
            dimension_semantics=("parallel",)),        # batch axis across TCs on v7x
    )(x2d, w1, b1, w2, b2, w3, b3)

    return out[:B, :]


def init_params(key, input_dim=4, history=4, hidden_dim=128, n_actions=4):
    """Deterministic init matching nn.Linear default (uniform +/- 1/sqrt(fan_in)).

    Weights stored as [in, out] (transposed relative to PyTorch's [out, in])."""
    def linear(k, fan_in, fan_out):
        kw, kb = jax.random.split(k)
        bound = 1.0 / jnp.sqrt(fan_in)
        w = jax.random.uniform(kw, (fan_in, fan_out), jnp.float32, -bound, bound)
        b = jax.random.uniform(kb, (1, fan_out), jnp.float32, -bound, bound)
        return w, b

    k1, k2, k3 = jax.random.split(key, 3)
    w1, b1 = linear(k1, input_dim * history, hidden_dim)
    w2, b2 = linear(k2, hidden_dim, hidden_dim)
    w3, b3 = linear(k3, hidden_dim, n_actions)
    return (w1, b1, w2, b2, w3, b3)


def _ref_forward(x, params, use_bf16=True):
    """Plain-JAX reference mirroring the kernel's bf16-MXU / f32-accumulate math."""
    w1, b1, w2, b2, w3, b3 = params
    B = x.shape[0]
    xr = x.reshape(B, -1).astype(jnp.float32)
    rd = ((lambda a: a.astype(jnp.bfloat16).astype(jnp.float32))
          if use_bf16 else (lambda a: a))
    h = jnp.maximum(jnp.dot(rd(xr), rd(w1), precision=jax.lax.Precision.HIGHEST) + b1, 0.0)
    h = jnp.maximum(jnp.dot(rd(h), rd(w2), precision=jax.lax.Precision.HIGHEST) + b2, 0.0)
    return jnp.dot(rd(h), rd(w3), precision=jax.lax.Precision.HIGHEST) + b3


if __name__ == "__main__":
    key = jax.random.PRNGKey(0)
    kx, kp = jax.random.split(key)

    # Small shapes consistent with the module: batch=2, history=4, input_dim=4.
    B, input_dim, history, hidden_dim, n_actions = 2, 4, 4, 128, 4
    x = jax.random.normal(kx, (B, history, input_dim), dtype=jnp.float32)
    params = init_params(kp, input_dim, history, hidden_dim, n_actions)

    pparams = prepare_params(params)              # one-time weight prep
    fwd = jax.jit(network_forward)                # per-call work = one pallas_call

    out = fwd(x, pparams)
    jax.block_until_ready(out)

    ref = _ref_forward(x, params)
    assert out.shape == (B, n_actions)
    err = jnp.max(jnp.abs(out - ref))
    assert jnp.allclose(out, ref, atol=1e-3, rtol=1e-3), f"max abs err {err}"

    print("KERNEL_OK")
</pallas_src>

<mosaic_0001>
module attributes {stable_mosaic.version = 11 : i64} {
  func.func @_mlp_kernel(%arg0: i32, %arg1: memref<8x16xbf16, #tpu.memory_space<vmem>>, %arg2: memref<16x128xbf16, #tpu.memory_space<vmem>>, %arg3: memref<1x128xf32, #tpu.memory_space<vmem>>, %arg4: memref<128x128xbf16, #tpu.memory_space<vmem>>, %arg5: memref<1x128xf32, #tpu.memory_space<vmem>>, %arg6: memref<128x4xbf16, #tpu.memory_space<vmem>>, %arg7: memref<1x4xf32, #tpu.memory_space<vmem>>, %arg8: memref<8x4xf32, #tpu.memory_space<vmem>>) attributes {dimension_semantics = [#tpu.dimension_semantics<parallel>], iteration_bounds = array<i64: 1>, scalar_prefetch = 0 : i64, scratch_operands = 0 : i64, tpu.core_type = #tpu.core_type<tc>, window_params = [{transform_indices = @transform_0, window_bounds = array<i64: 8, 16>}, {pipeline_mode = #tpu.pipeline_mode<synchronous>, transform_indices = @transform_1, window_bounds = array<i64: 16, 128>}, {pipeline_mode = #tpu.pipeline_mode<synchronous>, transform_indices = @transform_2, window_bounds = array<i64: 1, 128>}, {pipeline_mode = #tpu.pipeline_mode<synchronous>, transform_indices = @transform_3, window_bounds = array<i64: 128, 128>}, {pipeline_mode = #tpu.pipeline_mode<synchronous>, transform_indices = @transform_4, window_bounds = array<i64: 1, 128>}, {pipeline_mode = #tpu.pipeline_mode<synchronous>, transform_indices = @transform_5, window_bounds = array<i64: 128, 4>}, {pipeline_mode = #tpu.pipeline_mode<synchronous>, transform_indices = @transform_6, window_bounds = array<i64: 1, 4>}, {transform_indices = @transform_7, window_bounds = array<i64: 8, 4>}]} {
    %c0 = arith.constant 0 : index
    %c0_0 = arith.constant 0 : index
    %0 = vector.load %arg1[%c0, %c0_0] : memref<8x16xbf16, #tpu.memory_space<vmem>>, vector<8x16xbf16>
    %c0_1 = arith.constant 0 : index
    %c0_2 = arith.constant 0 : index
    %1 = vector.load %arg2[%c0_1, %c0_2] : memref<16x128xbf16, #tpu.memory_space<vmem>>, vector<16x128xbf16>
    %cst = arith.constant dense<0.000000e+00> : vector<8x128xf32>
    %2 = tpu.matmul %0, %1, %cst {dimension_numbers = #tpu.dot_dimension_numbers<[1], [0], [0], [1], [0, 0, 1, 1], [], []>} : vector<8x16xbf16>, vector<16x128xbf16>, vector<8x128xf32> -> vector<8x128xf32>
    %c0_3 = arith.constant 0 : index
    %c0_4 = arith.constant 0 : index
    %3 = vector.load %arg3[%c0_3, %c0_4] : memref<1x128xf32, #tpu.memory_space<vmem>>, vector<1x128xf32>
    %4 = vector.broadcast %3 : vector<1x128xf32> to vector<8x128xf32>
    %5 = arith.addf %2, %4 : vector<8x128xf32>
    %cst_5 = arith.constant 0.000000e+00 : f32
    %6 = vector.broadcast %cst_5 : f32 to vector<8x128xf32>
    %7 = arith.maximumf %5, %6 : vector<8x128xf32>
    %8 = arith.truncf %7 : vector<8x128xf32> to vector<8x128xbf16>
    %c0_6 = arith.constant 0 : index
    %c0_7 = arith.constant 0 : index
    %9 = vector.load %arg4[%c0_6, %c0_7] : memref<128x128xbf16, #tpu.memory_space<vmem>>, vector<128x128xbf16>
    %cst_8 = arith.constant dense<0.000000e+00> : vector<8x128xf32>
    %10 = tpu.matmul %8, %9, %cst_8 {dimension_numbers = #tpu.dot_dimension_numbers<[1], [0], [0], [1], [0, 0, 1, 1], [], []>} : vector<8x128xbf16>, vector<128x128xbf16>, vector<8x128xf32> -> vector<8x128xf32>
    %c0_9 = arith.constant 0 : index
    %c0_10 = arith.constant 0 : index
    %11 = vector.load %arg5[%c0_9, %c0_10] : memref<1x128xf32, #tpu.memory_space<vmem>>, vector<1x128xf32>
    %12 = vector.broadcast %11 : vector<1x128xf32> to vector<8x128xf32>
    %13 = arith.addf %10, %12 : vector<8x128xf32>
    %cst_11 = arith.constant 0.000000e+00 : f32
    %14 = vector.broadcast %cst_11 : f32 to vector<8x128xf32>
    %15 = arith.maximumf %13, %14 : vector<8x128xf32>
    %16 = arith.truncf %15 : vector<8x128xf32> to vector<8x128xbf16>
    %c0_12 = arith.constant 0 : index
    %c0_13 = arith.constant 0 : index
    %17 = vector.load %arg6[%c0_12, %c0_13] : memref<128x4xbf16, #tpu.memory_space<vmem>>, vector<128x4xbf16>
    %cst_14 = arith.constant dense<0.000000e+00> : vector<8x4xf32>
    %18 = tpu.matmul %16, %17, %cst_14 {dimension_numbers = #tpu.dot_dimension_numbers<[1], [0], [0], [1], [0, 0, 1, 1], [], []>} : vector<8x128xbf16>, vector<128x4xbf16>, vector<8x4xf32> -> vector<8x4xf32>
    %c0_15 = arith.constant 0 : index
    %c0_16 = arith.constant 0 : index
    %19 = vector.load %arg7[%c0_15, %c0_16] : memref<1x4xf32, #tpu.memory_space<vmem>>, vector<1x4xf32>
    %20 = vector.broadcast %19 : vector<1x4xf32> to vector<8x4xf32>
    %21 = arith.addf %18, %20 : vector<8x4xf32>
    %c0_17 = arith.constant 0 : index
    %c0_18 = arith.constant 0 : index
    %22 = vector.load %arg8[%c0_17, %c0_18] : memref<8x4xf32, #tpu.memory_space<vmem>>, vector<8x4xf32>
    tpu.vector_store %arg8[%c0_17, %c0_18], %21 {strides = array<i32>} : memref<8x4xf32, #tpu.memory_space<vmem>>, vector<8x4xf32>,
    return
  }
  func.func @transform_0(%arg0: i32) -> (i32, i32) {
    %c0_i32 = arith.constant 0 : i32
    %c0_i32_0 = arith.constant 0 : i32
    return %arg0, %c0_i32 : i32, i32
  }
  func.func @transform_1(%arg0: i32) -> (i32, i32) {
    %c0_i32 = arith.constant 0 : i32
    %c0_i32_0 = arith.constant 0 : i32
    %c0_i32_1 = arith.constant 0 : i32
    return %c0_i32, %c0_i32_0 : i32, i32
  }
  func.func @transform_2(%arg0: i32) -> (i32, i32) {
    %c0_i32 = arith.constant 0 : i32
    %c0_i32_0 = arith.constant 0 : i32
    %c0_i32_1 = arith.constant 0 : i32
    return %c0_i32, %c0_i32_0 : i32, i32
  }
  func.func @transform_3(%arg0: i32) -> (i32, i32) {
    %c0_i32 = arith.constant 0 : i32
    %c0_i32_0 = arith.constant 0 : i32
    %c0_i32_1 = arith.constant 0 : i32
    return %c0_i32, %c0_i32_0 : i32, i32
  }
  func.func @transform_4(%arg0: i32) -> (i32, i32) {
    %c0_i32 = arith.constant 0 : i32
    %c0_i32_0 = arith.constant 0 : i32
    %c0_i32_1 = arith.constant 0 : i32
    return %c0_i32, %c0_i32_0 : i32, i32
  }
  func.func @transform_5(%arg0: i32) -> (i32, i32) {
    %c0_i32 = arith.constant 0 : i32
    %c0_i32_0 = arith.constant 0 : i32
    %c0_i32_1 = arith.constant 0 : i32
    return %c0_i32, %c0_i32_0 : i32, i32
  }
  func.func @transform_6(%arg0: i32) -> (i32, i32) {
    %c0_i32 = arith.constant 0 : i32
    %c0_i32_0 = arith.constant 0 : i32
    %c0_i32_1 = arith.constant 0 : i32
    return %c0_i32, %c0_i32_0 : i32, i32
  }
  func.func @transform_7(%arg0: i32) -> (i32, i32) {
    %c0_i32 = arith.constant 0 : i32
    %c0_i32_0 = arith.constant 0 : i32
    return %arg0, %c0_i32 : i32, i32
  }
}

</mosaic_0001>

<llo_original>
// kernel: network_forward.1
$region0: #{network_forward.1}
  #allocation0 [shape = 'u32[]', space=smem, size = 0x4, offset = 0x4, fixed_abs, tag = 'smem constant byte address 0x4 - core index']
  #allocation1 [shape = 'u32[72,128]{1,0:T(1,128)}', space=vmem, size = 0x9000, scoped, tag = 'internal scratch']
  %s0 = inlined_call_operand.vmem [shape: bf16[8,16], index: 0, kind: input, shape index: {}]
  %s1 = inlined_call_operand.vmem [shape: bf16[16,128], index: 1, kind: input, shape index: {}]
  %s2 = inlined_call_operand.vmem [shape: f32[1,128], index: 2, kind: input, shape index: {}]
  %s3 = inlined_call_operand.vmem [shape: bf16[128,128], index: 3, kind: input, shape index: {}]
  %s4 = inlined_call_operand.vmem [shape: f32[1,128], index: 4, kind: input, shape index: {}]
  %s5 = inlined_call_operand.vmem [shape: bf16[128,4], index: 5, kind: input, shape index: {}]
  %s6 = inlined_call_operand.vmem [shape: f32[1,4], index: 6, kind: input, shape index: {}]
  %s7 = inlined_call_operand.vmem [shape: f32[8,4], index: 7, kind: output, shape index: {}]
  %s8 = sld [smem:[#allocation0]]
  $region38: #{network_forward.1} parent=0
    _
  %s10 = ssub.s32 1, %s8
  %s11 = scalar_select 0, %s10, %s8
  // Predicated region
  $region2: #{network_forward.1} parent=0 // pred_check
    _
  $region3: #{network_forward.1} parent=0 // pred_check_branch
    %13 = sbr.rel (0) target = $region5
  $region4: #{network_forward.1} parent=0 // pred_region
    _
  $region5: #{network_forward.1} parent=0 // pred_fallthru
    _
  // Predicated region
  $region6: #{network_forward.1} parent=0 // pred_check
    _
  $region7: #{network_forward.1} parent=0 // pred_check_branch
    %15 = sbr.rel (0) target = $region9
  $region8: #{network_forward.1} parent=0 // pred_region
    _
  $region9: #{network_forward.1} parent=0 // pred_fallthru
    _
  // Predicated region
  $region10: #{network_forward.1} parent=0 // pred_check
    _
  $region11: #{network_forward.1} parent=0 // pred_check_branch
    %17 = sbr.rel (0) target = $region13
  $region12: #{network_forward.1} parent=0 // pred_region
    _
  $region13: #{network_forward.1} parent=0 // pred_fallthru
    _
  // Predicated region
  $region14: #{network_forward.1} parent=0 // pred_check
    _
  $region15: #{network_forward.1} parent=0 // pred_check_branch
    %19 = sbr.rel (0) target = $region17
  $region16: #{network_forward.1} parent=0 // pred_region
    _
  $region17: #{network_forward.1} parent=0 // pred_fallthru
    _
  // Predicated region
  $region18: #{network_forward.1} parent=0 // pred_check
    _
  $region19: #{network_forward.1} parent=0 // pred_check_branch
    %21 = sbr.rel (0) target = $region21
  $region20: #{network_forward.1} parent=0 // pred_region
    _
  $region21: #{network_forward.1} parent=0 // pred_fallthru
    _
  // Predicated region
  $region22: #{network_forward.1} parent=0 // pred_check
    _
  $region23: #{network_forward.1} parent=0 // pred_check_branch
    %23 = sbr.rel (0) target = $region25
  $region24: #{network_forward.1} parent=0 // pred_region
    _
  $region25: #{network_forward.1} parent=0 // pred_fallthru
    _
  // Predicated region
  $region26: #{network_forward.1} parent=0 // pred_check
    _
  $region27: #{network_forward.1} parent=0 // pred_check_branch
    %25 = sbr.rel (0) target = $region29
  $region28: #{network_forward.1} parent=0 // pred_region
    _
  $region29: #{network_forward.1} parent=0 // pred_fallthru
    _
  %v27 = vld [vmem:[%s0] sm:$0xf]
  %v28 = vld [vmem:[%s1] sm:$0xf]
  %v29 = vld [vmem:[%s1 + $0x4] sm:$0xf]
  %v30 = vld [vmem:[%s2] sm:$0x1]
  %v32 = vperm.slane %v30, 0
  %v36 = vunpack.c.l.b16 %v28
  %v37 = vunpack.c.l.b16 %v29
  %v38 = vpack.c.b16 %v37, %v36
  %vm40 = vcmask 130048
  %v42 = vsel %vm40, %v27, 0
  %44 = vmatpush.bf16.msra.mxu0 0
  %45 = vmatpush.bf16.msra.mxu0 0
  %46 = vmatpush.bf16.msra.mxu0 0
  %47 = vmatpush.bf16.msra.mxu0 0
  %48 = vmatpush.bf16.msra.mxu0 0
  %49 = vmatpush.bf16.msra.mxu0 0
  %50 = vmatpush.bf16.msra.mxu0 0
  %51 = vmatpush.bf16.msra.mxu0 %v38
  %52 = vmatmul.bf16.gmra.mxu0 %v42
  %v53 = vpop.f32.mrf.mxu0
  %v54 = vadd.f32 %v32, %v53
  %v55 = vpop.f32.mrf.mxu0
  %56 = vdwg.mxu0
  %v57 = vmax.f32 %v54, 0.0
  %v58 = vpack.c.bf16 %v57, %v57
  %v59 = vld [vmem:[%s3] sm:$0xf]
  %v60 = vld [vmem:[%s3 + $0x4] sm:$0xf]
  %v61 = vld [vmem:[%s3 + $0x8] sm:$0xf]
  %v62 = vld [vmem:[%s3 + $0xc] sm:$0xf]
  %v63 = vld [vmem:[%s3 + $0x10] sm:$0xf]
  %v64 = vld [vmem:[%s3 + $0x14] sm:$0xf]
  %v65 = vld [vmem:[%s3 + $0x18] sm:$0xf]
  %v66 = vld [vmem:[%s3 + $0x1c] sm:$0xf]
  %v67 = vld [vmem:[%s3 + $0x20] sm:$0xf]
  %v68 = vld [vmem:[%s3 + $0x24] sm:$0xf]
  %v69 = vld [vmem:[%s3 + $0x28] sm:$0xf]
  %v70 = vld [vmem:[%s3 + $0x2c] sm:$0xf]
  %v71 = vld [vmem:[%s3 + $0x30] sm:$0xf]
  %v72 = vld [vmem:[%s3 + $0x34] sm:$0xf]
  %v73 = vld [vmem:[%s3 + $0x38] sm:$0xf]
  %v74 = vld [vmem:[%s3 + $0x3c] sm:$0xf]
  %v75 = vld [vmem:[%s4] sm:$0x1]
  %v77 = vperm.slane %v75, 0
  %v95 = vunpack.c.l.b16 %v59
  %v96 = vunpack.c.l.b16 %v60
  %v97 = vunpack.c.l.b16 %v61
  %v98 = vunpack.c.l.b16 %v62
  %v99 = vunpack.c.l.b16 %v63
  %v100 = vunpack.c.l.b16 %v64
  %v101 = vunpack.c.l.b16 %v65
  %v102 = vunpack.c.l.b16 %v66
  %v103 = vunpack.c.l.b16 %v67
  %v104 = vunpack.c.l.b16 %v68
  %v105 = vunpack.c.l.b16 %v69
  %v106 = vunpack.c.l.b16 %v70
  %v107 = vunpack.c.l.b16 %v71
  %v108 = vunpack.c.l.b16 %v72
  %v109 = vunpack.c.l.b16 %v73
  %v110 = vunpack.c.l.b16 %v74
  %v111 = vpack.c.b16 %v96, %v95
  %v112 = vpack.c.b16 %v98, %v97
  %v113 = vpack.c.b16 %v100, %v99
  %v114 = vpack.c.b16 %v102, %v101
  %v115 = vpack.c.b16 %v104, %v103
  %v116 = vpack.c.b16 %v106, %v105
  %v117 = vpack.c.b16 %v108, %v107
  %v118 = vpack.c.b16 %v110, %v109
  %127 = vmatpush.bf16.msra.mxu0 %v118
  %128 = vmatpush.bf16.msra.mxu0 %v117
  %129 = vmatpush.bf16.msra.mxu0 %v116
  %130 = vmatpush.bf16.msra.mxu0 %v115
  %131 = vmatpush.bf16.msra.mxu0 %v114
  %132 = vmatpush.bf16.msra.mxu0 %v113
  %133 = vmatpush.bf16.msra.mxu0 %v112
  %134 = vmatpush.bf16.msra.mxu0 %v111
  %135 = vmatmul.bf16.gmra.mxu0 %v58
  %v136 = vpop.f32.mrf.mxu0
  %v137 = vadd.f32 %v77, %v136
  %v138 = vpop.f32.mrf.mxu0
  %139 = vdwg.mxu0
  %v140 = vmax.f32 %v137, 0.0
  %v141 = vpack.c.bf16 %v140, %v140
  %v142 = vld [vmem:[%s5] sm:$0xf]
  %v143 = vld [vmem:[%s5 + $0x4] sm:$0xf]
  %v144 = vld [vmem:[%s5 + $0x8] sm:$0xf]
  %v145 = vld [vmem:[%s5 + $0xc] sm:$0xf]
  %v146 = vld [vmem:[%s5 + $0x10] sm:$0xf]
  %v147 = vld [vmem:[%s5 + $0x14] sm:$0xf]
  %v148 = vld [vmem:[%s5 + $0x18] sm:$0xf]
  %v149 = vld [vmem:[%s5 + $0x1c] sm:$0xf]
  %v150 = vld [vmem:[%s5 + $0x20] sm:$0xf]
  %v151 = vld [vmem:[%s5 + $0x24] sm:$0xf]
  %v152 = vld [vmem:[%s5 + $0x28] sm:$0xf]
  %v153 = vld [vmem:[%s5 + $0x2c] sm:$0xf]
  %v154 = vld [vmem:[%s5 + $0x30] sm:$0xf]
  %v155 = vld [vmem:[%s5 + $0x34] sm:$0xf]
  %v156 = vld [vmem:[%s5 + $0x38] sm:$0xf]
  %v157 = vld [vmem:[%s5 + $0x3c] sm:$0xf]
  %v158 = vld [vmem:[%s6] sm:$0x1]
  %v160 = vperm.slane %v158, 0
  %v178 = vunpack.c.l.b16 %v142
  %v179 = vunpack.c.l.b16 %v143
  %v180 = vunpack.c.l.b16 %v144
  %v181 = vunpack.c.l.b16 %v145
  %v182 = vunpack.c.l.b16 %v146
  %v183 = vunpack.c.l.b16 %v147
  %v184 = vunpack.c.l.b16 %v148
  %v185 = vunpack.c.l.b16 %v149
  %v186 = vunpack.c.l.b16 %v150
  %v187 = vunpack.c.l.b16 %v151
  %v188 = vunpack.c.l.b16 %v152
  %v189 = vunpack.c.l.b16 %v153
  %v190 = vunpack.c.l.b16 %v154
  %v191 = vunpack.c.l.b16 %v155
  %v192 = vunpack.c.l.b16 %v156
  %v193 = vunpack.c.l.b16 %v157
  %v194 = vpack.c.b16 %v179, %v178
  %v195 = vpack.c.b16 %v181, %v180
  %v196 = vpack.c.b16 %v183, %v182
  %v197 = vpack.c.b16 %v185, %v184
  %v198 = vpack.c.b16 %v187, %v186
  %v199 = vpack.c.b16 %v189, %v188
  %v200 = vpack.c.b16 %v191, %v190
  %v201 = vpack.c.b16 %v193, %v192
  %210 = vmatpush.bf16.msra.mxu0 %v201
  %211 = vmatpush.bf16.msra.mxu0 %v200
  %212 = vmatpush.bf16.msra.mxu0 %v199
  %213 = vmatpush.bf16.msra.mxu0 %v198
  %214 = vmatpush.bf16.msra.mxu0 %v197
  %215 = vmatpush.bf16.msra.mxu0 %v196
  %216 = vmatpush.bf16.msra.mxu0 %v195
  %217 = vmatpush.bf16.msra.mxu0 %v194
  %218 = vmatmul.bf16.gmra.mxu0 %v141
  %v219 = vpop.f32.mrf.mxu0
  %v220 = vadd.f32 %v160, %v219
  %v221 = vpop.f32.mrf.mxu0
  %222 = vdwg.mxu0
  %vm223 = vcmask 31744
  %224 = vst.msk [vmem:[%s7] sm:$0xff] %vm223, %v220
  // Predicated region
  $region30: #{network_forward.1} parent=0 // pred_check
    _
  $region31: #{network_forward.1} parent=0 // pred_check_branch
    %226 = sbr.rel (0) target = $region33
  $region32: #{network_forward.1} parent=0 // pred_region
    _
  $region33: #{network_forward.1} parent=0 // pred_fallthru
    _
  // Predicated region
  $region34: #{network_forward.1} parent=0 // pred_check
    _
  $region35: #{network_forward.1} parent=0 // pred_check_branch
    %228 = sbr.rel (0) target = $region37
  $region36: #{network_forward.1} parent=0 // pred_region
    _
  $region37: #{network_forward.1} parent=0 // pred_fallthru
    _

</llo_original>
